<compile_context>
chip_gen: v5e
topology: v5e:2x2
jax: 0.10.0
libtpu: 0.0.40
codegen_flags: <defaults>
</compile_context>

<pallas_src>
import jax
import jax.numpy as jnp
from jax.experimental import pallas as pl
from jax.experimental.pallas import tpu as pltpu


def lstm1_kernel(xh_ref, c_ref, w_ref, b_ref, out_ref):
    """Fused LSTMCell + Sentinel.

    Shapes (full blocks, everything resident in VMEM):
      xh : (B, Din+H)   -- [x_t | h_last]
      c  : (B, H)       -- m_last (previous cell state), f32
      w  : (Din+H, 5H)  -- packed weights, columns = [i f g o sentinel]
      b  : (1, 5H)      -- packed biases (b_ih+b_hh for gates, b_x+b_h for sentinel)
      out: (B, 3H)      -- packed [h_t | m_t | s_t]
    """
    H = c_ref.shape[-1]

    xh = xh_ref[...]
    c = c_ref[...].astype(jnp.float32)

    # Single MXU pass for all five gate blocks, f32 accumulation.
    gates = (jnp.dot(xh, w_ref[...], preferred_element_type=jnp.float32)
             + b_ref[...])

    i_g = jax.nn.sigmoid(gates[:, 0 * H:1 * H])
    f_g = jax.nn.sigmoid(gates[:, 1 * H:2 * H])
    g_g = jnp.tanh(gates[:, 2 * H:3 * H])
    o_g = jax.nn.sigmoid(gates[:, 3 * H:4 * H])
    sen = jax.nn.sigmoid(gates[:, 4 * H:5 * H])   # Sentinel gate

    c_new = f_g * c + i_g * g_g
    tanh_c = jnp.tanh(c_new)          # computed once, reused for h_t and s_t
    h_new = o_g * tanh_c
    s_t = sen * tanh_c

    # One lane-dense packed store instead of three narrow masked stores.
    out_ref[...] = jnp.concatenate([h_new, c_new, s_t], axis=-1).astype(out_ref.dtype)


def lstm1_forward(x_t, h_last, m_last, params, *, matmul_dtype=jnp.float32):
    """Single-step forward. Returns (h_t, m_t, s_t), each (B, H) float32.

    matmul_dtype: dtype the matmul operands (activations + packed weights) are
    cast to (e.g. jnp.bfloat16 on v6e/v7x). Accumulation is always f32 and all
    nonlinearities / cell updates stay in f32.
    """
    B, H = h_last.shape

    xh = jnp.concatenate([x_t, h_last], axis=-1).astype(matmul_dtype)  # (B, Din+H)
    w_all = params["w_all"].astype(matmul_dtype)                       # (Din+H, 5H)
    b_all = params["b_all"]                                            # (1, 5H) f32
    m_last = m_last.astype(jnp.float32)

    vmem = pl.BlockSpec(memory_space=pltpu.MemorySpace.VMEM)

    packed = pl.pallas_call(
        lstm1_kernel,
        out_shape=jax.ShapeDtypeStruct((B, 3 * H), jnp.float32),
        in_specs=[vmem, vmem, vmem, vmem],
        out_specs=vmem,
    )(xh, m_last, w_all, b_all)

    h_t = packed[:, 0 * H:1 * H]
    m_t = packed[:, 1 * H:2 * H]
    s_t = packed[:, 2 * H:3 * H]
    return h_t, m_t, s_t


def init_params(key, input_size, decoder_dim):
    """Parameters matching LSTM1.__init__ shapes, plus the packed kernel form."""
    k = jax.random.split(key, 8)
    H = decoder_dim
    D = input_size
    lstm_bound = 1.0 / jnp.sqrt(H)

    # nn.LSTMCell: weight_ih (4H, Din), weight_hh (4H, H), bias_ih/bias_hh (4H,)
    w_ih = jax.random.uniform(k[0], (4 * H, D), jnp.float32, -lstm_bound, lstm_bound)
    w_hh = jax.random.uniform(k[1], (4 * H, H), jnp.float32, -lstm_bound, lstm_bound)
    b_ih = jax.random.uniform(k[2], (4 * H,), jnp.float32, -lstm_bound, lstm_bound)
    b_hh = jax.random.uniform(k[3], (4 * H,), jnp.float32, -lstm_bound, lstm_bound)

    # Sentinel: Linear(D -> H), Linear(H -> H) with xavier_uniform weights.
    def xavier(kk, fan_out, fan_in):
        a = jnp.sqrt(6.0 / (fan_in + fan_out))
        return jax.random.uniform(kk, (fan_out, fan_in), jnp.float32, -a, a)

    w_x = xavier(k[4], H, D)
    w_h = xavier(k[5], H, H)
    b_x = jax.random.uniform(k[6], (H,), jnp.float32, -1.0 / jnp.sqrt(D), 1.0 / jnp.sqrt(D))
    b_h = jax.random.uniform(k[7], (H,), jnp.float32, -lstm_bound, lstm_bound)

    # --- pack into one (D+H, 5H) matrix; columns = [i f g o | sentinel] ---
    w_top = jnp.concatenate([w_ih.T, w_x.T], axis=1)   # (D, 5H)  rows multiply x_t
    w_bot = jnp.concatenate([w_hh.T, w_h.T], axis=1)   # (H, 5H)  rows multiply h_last
    w_all = jnp.concatenate([w_top, w_bot], axis=0)    # (D+H, 5H)
    b_all = jnp.concatenate([b_ih + b_hh, b_x + b_h])[None, :]   # (1, 5H)

    return {
        "w_all": w_all, "b_all": b_all,
        # unpacked copies kept only for the pure-JAX reference check below
        "w_ih": w_ih, "w_hh": w_hh, "b_ih": b_ih, "b_hh": b_hh,
        "w_x": w_x, "w_h": w_h, "b_x": b_x, "b_h": b_h,
    }


def reference_forward(x_t, h_last, m_last, p):
    """Pure-JAX reference mirroring torch.nn.LSTMCell + Sentinel (eval mode)."""
    H = h_last.shape[-1]
    gates = x_t @ p["w_ih"].T + p["b_ih"] + h_last @ p["w_hh"].T + p["b_hh"]
    i = jax.nn.sigmoid(gates[:, 0 * H:1 * H])
    f = jax.nn.sigmoid(gates[:, 1 * H:2 * H])
    g = jnp.tanh(gates[:, 2 * H:3 * H])
    o = jax.nn.sigmoid(gates[:, 3 * H:4 * H])
    c_new = f * m_last + i * g
    h_new = o * jnp.tanh(c_new)
    gate = jax.nn.sigmoid(x_t @ p["w_x"].T + p["b_x"] + h_last @ p["w_h"].T + p["b_h"])
    s_t = gate * jnp.tanh(c_new)
    return h_new, c_new, s_t


if __name__ == "__main__":
    # Small shapes: embed_dim=16, decoder_dim=32 -> input_size = 2*16 + 32 = 64
    B = 2
    embed_dim = 16
    decoder_dim = 32
    input_size = 2 * embed_dim + decoder_dim

    key = jax.random.PRNGKey(0)
    k_x, k_h, k_m, k_p = jax.random.split(key, 4)

    x_t = jax.random.normal(k_x, (B, input_size), jnp.float32)
    h_last = jax.random.normal(k_h, (B, decoder_dim), jnp.float32)
    m_last = jax.random.normal(k_m, (B, decoder_dim), jnp.float32)
    params = init_params(k_p, input_size, decoder_dim)

    h_ref, m_ref, s_ref = reference_forward(x_t, h_last, m_last, params)

    # f32 matmul path (matches the PyTorch fp32 module semantics)
    h_t, m_t, s_t = lstm1_forward(x_t, h_last, m_last, params)
    jax.block_until_ready((h_t, m_t, s_t))
    assert jnp.allclose(h_t, h_ref, atol=1e-5), "h_t mismatch (f32)"
    assert jnp.allclose(m_t, m_ref, atol=1e-5), "m_t mismatch (f32)"
    assert jnp.allclose(s_t, s_ref, atol=1e-5), "s_t mismatch (f32)"

    # bf16 matmul path (operands bf16, f32 accumulation + f32 nonlinearities)
    h_b, m_b, s_b = lstm1_forward(x_t, h_last, m_last, params,
                                  matmul_dtype=jnp.bfloat16)
    jax.block_until_ready((h_b, m_b, s_b))
    assert jnp.allclose(h_b, h_ref, atol=5e-2, rtol=5e-2), "h_t mismatch (bf16)"
    assert jnp.allclose(m_b, m_ref, atol=5e-2, rtol=5e-2), "m_t mismatch (bf16)"
    assert jnp.allclose(s_b, s_ref, atol=5e-2, rtol=5e-2), "s_t mismatch (bf16)"

    print("KERNEL_OK")
</pallas_src>

<mosaic_0001>
module attributes {stable_mosaic.version = 11 : i64} {
  func.func @lstm1_kernel(%arg0: memref<2x96xf32, #tpu.memory_space<vmem>>, %arg1: memref<2x32xf32, #tpu.memory_space<vmem>>, %arg2: memref<96x160xf32, #tpu.memory_space<vmem>>, %arg3: memref<1x160xf32, #tpu.memory_space<vmem>>, %arg4: memref<2x96xf32, #tpu.memory_space<vmem>>) attributes {dimension_semantics = [], scalar_prefetch = 0 : i64, scratch_operands = 0 : i64, tpu.core_type = #tpu.core_type<tc>} {
    %c0 = arith.constant 0 : index
    %c0_0 = arith.constant 0 : index
    %0 = vector.load %arg0[%c0, %c0_0] : memref<2x96xf32, #tpu.memory_space<vmem>>, vector<2x96xf32>
    %c0_1 = arith.constant 0 : index
    %c0_2 = arith.constant 0 : index
    %1 = vector.load %arg1[%c0_1, %c0_2] : memref<2x32xf32, #tpu.memory_space<vmem>>, vector<2x32xf32>
    %c0_3 = arith.constant 0 : index
    %c0_4 = arith.constant 0 : index
    %2 = vector.load %arg2[%c0_3, %c0_4] : memref<96x160xf32, #tpu.memory_space<vmem>>, vector<96x160xf32>
    %cst = arith.constant dense<0.000000e+00> : vector<2x160xf32>
    %3 = tpu.matmul %0, %2, %cst {dimension_numbers = #tpu.dot_dimension_numbers<[1], [0], [0], [1], [0, 0, 1, 1], [], []>} : vector<2x96xf32>, vector<96x160xf32>, vector<2x160xf32> -> vector<2x160xf32>
    %c0_5 = arith.constant 0 : index
    %c0_6 = arith.constant 0 : index
    %4 = vector.load %arg3[%c0_5, %c0_6] : memref<1x160xf32, #tpu.memory_space<vmem>>, vector<1x160xf32>
    %5 = vector.broadcast %4 : vector<1x160xf32> to vector<2x160xf32>
    %6 = arith.addf %3, %5 : vector<2x160xf32>
    %7 = vector.extract_strided_slice %6 {offsets = [0, 0], sizes = [2, 32], strides = [1, 1]} : vector<2x160xf32> to vector<2x32xf32>
    %8 = arith.negf %7 : vector<2x32xf32>
    %9 = math.exp %8 : vector<2x32xf32>
    %cst_7 = arith.constant 1.000000e+00 : f32
    %10 = vector.broadcast %cst_7 : f32 to vector<2x32xf32>
    %11 = arith.addf %10, %9 : vector<2x32xf32>
    %12 = arith.divf %10, %11 : vector<2x32xf32>
    %13 = vector.extract_strided_slice %6 {offsets = [0, 32], sizes = [2, 32], strides = [1, 1]} : vector<2x160xf32> to vector<2x32xf32>
    %14 = arith.negf %13 : vector<2x32xf32>
    %15 = math.exp %14 : vector<2x32xf32>
    %cst_8 = arith.constant 1.000000e+00 : f32
    %16 = vector.broadcast %cst_8 : f32 to vector<2x32xf32>
    %17 = arith.addf %16, %15 : vector<2x32xf32>
    %18 = arith.divf %16, %17 : vector<2x32xf32>
    %19 = vector.extract_strided_slice %6 {offsets = [0, 64], sizes = [2, 32], strides = [1, 1]} : vector<2x160xf32> to vector<2x32xf32>
    %20 = math.tanh %19 : vector<2x32xf32>
    %21 = vector.extract_strided_slice %6 {offsets = [0, 96], sizes = [2, 32], strides = [1, 1]} : vector<2x160xf32> to vector<2x32xf32>
    %22 = arith.negf %21 : vector<2x32xf32>
    %23 = math.exp %22 : vector<2x32xf32>
    %cst_9 = arith.constant 1.000000e+00 : f32
    %24 = vector.broadcast %cst_9 : f32 to vector<2x32xf32>
    %25 = arith.addf %24, %23 : vector<2x32xf32>
    %26 = arith.divf %24, %25 : vector<2x32xf32>
    %27 = vector.extract_strided_slice %6 {offsets = [0, 128], sizes = [2, 32], strides = [1, 1]} : vector<2x160xf32> to vector<2x32xf32>
    %28 = arith.negf %27 : vector<2x32xf32>
    %29 = math.exp %28 : vector<2x32xf32>
    %cst_10 = arith.constant 1.000000e+00 : f32
    %30 = vector.broadcast %cst_10 : f32 to vector<2x32xf32>
    %31 = arith.addf %30, %29 : vector<2x32xf32>
    %32 = arith.divf %30, %31 : vector<2x32xf32>
    %33 = arith.mulf %18, %1 : vector<2x32xf32>
    %34 = arith.mulf %12, %20 : vector<2x32xf32>
    %35 = arith.addf %33, %34 : vector<2x32xf32>
    %36 = math.tanh %35 : vector<2x32xf32>
    %37 = arith.mulf %26, %36 : vector<2x32xf32>
    %38 = arith.mulf %32, %36 : vector<2x32xf32>
    %39 = tpu.concatenate %37, %35, %38 in 1 : vector<2x32xf32>, vector<2x32xf32>, vector<2x32xf32> -> vector<2x96xf32>
    %c0_11 = arith.constant 0 : index
    %c0_12 = arith.constant 0 : index
    %40 = vector.load %arg4[%c0_11, %c0_12] : memref<2x96xf32, #tpu.memory_space<vmem>>, vector<2x96xf32>
    tpu.vector_store %arg4[%c0_11, %c0_12], %39 {strides = array<i32>} : memref<2x96xf32, #tpu.memory_space<vmem>>, vector<2x96xf32>,
    return
  }
}

</mosaic_0001>

<llo_original>
// kernel: tpu_custom_call.1
$region0: #{tpu_custom_call.1}
  #allocation0 [shape = 'u32[]', space=smem, size = 0x4, offset = 0x4, fixed_abs, tag = 'smem constant byte address 0x4 - core index']
  #allocation1 [shape = 'u32[72,128]{1,0:T(1,128)}', space=vmem, size = 0x9000, scoped, tag = 'internal scratch']
  %s0 = inlined_call_operand.vmem [shape: f32[2,96], index: 0, kind: input, shape index: {}]
  %s1 = inlined_call_operand.vmem [shape: f32[2,32], index: 1, kind: input, shape index: {}]
  %s2 = inlined_call_operand.vmem [shape: f32[96,160], index: 2, kind: input, shape index: {}]
  %s3 = inlined_call_operand.vmem [shape: f32[1,160], index: 3, kind: input, shape index: {}]
  %s4 = inlined_call_operand.hbm [shape: f32[2,96], index: 4, kind: output, shape index: {}]
  %s5 = sld [smem:[#allocation0]]
  $region26: #{tpu_custom_call.1} parent=0
    _
  %s7 = ssub.s32 1, %s5
  %s8 = scalar_select 0, %s7, %s5
  $region1: #{tpu_custom_call.1} parent=0
    #allocation2 [shape = 'u8[1024]{0}', space=vmem, size = 0x400, scoped, tag = 'output window, operand 0, single buffered']
    #allocation3 [shape = 's32[1]{0}', space=sflag, size = 0x4, scoped, tag = 'scoped memory for tpu_custom_call.1']
    %9 = vsyncpa [#allocation3], 0
    // Predicated region
    $region2: #{tpu_custom_call.1} parent=1 // pred_check
      _
    $region3: #{tpu_custom_call.1} parent=1 // pred_check_branch
      %11 = sbr.rel (0) target = $region5
    $region4: #{tpu_custom_call.1} parent=1 // pred_region
      _
    $region5: #{tpu_custom_call.1} parent=1 // pred_fallthru
      _
    // Predicated region
    $region6: #{tpu_custom_call.1} parent=1 // pred_check
      _
    $region7: #{tpu_custom_call.1} parent=1 // pred_check_branch
      %13 = sbr.rel (0) target = $region9
    $region8: #{tpu_custom_call.1} parent=1 // pred_region
      _
    $region9: #{tpu_custom_call.1} parent=1 // pred_fallthru
      _
    // Predicated region
    $region10: #{tpu_custom_call.1} parent=1 // pred_check
      _
    $region11: #{tpu_custom_call.1} parent=1 // pred_check_branch
      %15 = sbr.rel (0) target = $region13
    $region12: #{tpu_custom_call.1} parent=1 // pred_region
      _
    $region13: #{tpu_custom_call.1} parent=1 // pred_fallthru
      _
    // Predicated region
    $region14: #{tpu_custom_call.1} parent=1 // pred_check
      _
    $region15: #{tpu_custom_call.1} parent=1 // pred_check_branch
      %17 = sbr.rel (0) target = $region17
    $region16: #{tpu_custom_call.1} parent=1 // pred_region
      _
    $region17: #{tpu_custom_call.1} parent=1 // pred_fallthru
      _
    %v18 = vld [vmem:[%s0] sm:$0x3]
    %v19 = vld [vmem:[%s1] sm:$0x3]
    %v20 = vld [vmem:[%s2] sm:$0xff]
    %v21 = vld [vmem:[%s2 + $0x8] sm:$0xff]
    %v22 = vld [vmem:[%s2 + $0x10] sm:$0xff]
    %v23 = vld [vmem:[%s2 + $0x18] sm:$0xff]
    %v24 = vld [vmem:[%s2 + $0x20] sm:$0xff]
    %v25 = vld [vmem:[%s2 + $0x28] sm:$0xff]
    %v26 = vld [vmem:[%s2 + $0x30] sm:$0xff]
    %v27 = vld [vmem:[%s2 + $0x38] sm:$0xff]
    %v28 = vld [vmem:[%s2 + $0x40] sm:$0xff]
    %v29 = vld [vmem:[%s2 + $0x48] sm:$0xff]
    %v30 = vld [vmem:[%s2 + $0x50] sm:$0xff]
    %v31 = vld [vmem:[%s2 + $0x58] sm:$0xff]
    %v32 = vld [vmem:[%s2 + $0x60] sm:$0xff]
    %v33 = vld [vmem:[%s2 + $0x68] sm:$0xff]
    %v34 = vld [vmem:[%s2 + $0x70] sm:$0xff]
    %v35 = vld [vmem:[%s2 + $0x78] sm:$0xff]
    %v36 = vld [vmem:[%s2 + $0x80] sm:$0xff]
    %v37 = vld [vmem:[%s2 + $0x88] sm:$0xff]
    %v38 = vld [vmem:[%s2 + $0x90] sm:$0xff]
    %v39 = vld [vmem:[%s2 + $0x98] sm:$0xff]
    %v40 = vld [vmem:[%s2 + $0xa0] sm:$0xff]
    %v41 = vld [vmem:[%s2 + $0xa8] sm:$0xff]
    %v42 = vld [vmem:[%s2 + $0xb0] sm:$0xff]
    %v43 = vld [vmem:[%s2 + $0xb8] sm:$0xff]
    %v44 = vld [vmem:[%s3] sm:$0x3]
    %v46 = vperm.slane %v44, 0
    %v47 = vperm.slane %v44, 1
    %vm50 = vcmask 785408
    %v52 = vsel %vm50, %v18, 0
    %54 = vmatpush.msra.mxu0 0.0
    %55 = vmatpush.msra.mxu0 0.0
    %56 = vmatpush.msra.mxu0 0.0
    %57 = vmatpush.msra.mxu0 0.0
    %58 = vmatpush.msra.mxu0 %v42
    %59 = vmatpush.msra.mxu0 %v40
    %60 = vmatpush.msra.mxu0 %v38
    %61 = vmatpush.msra.mxu0 %v36
    %62 = vmatpush.msra.mxu0 %v34
    %63 = vmatpush.msra.mxu0 %v32
    %64 = vmatpush.msra.mxu0 %v30
    %65 = vmatpush.msra.mxu0 %v28
    %66 = vmatpush.msra.mxu0 %v26
    %67 = vmatpush.msra.mxu0 %v24
    %68 = vmatpush.msra.mxu0 %v22
    %69 = vmatpush.msra.mxu0 %v20
    %70 = vmatmul.f32.gmra.mxu0 %v52
    %v71 = vpop.f32.mrf.mxu0
    %v72 = vadd.f32 %v46, %v71
    %73 = vdwg.mxu0
    %74 = vmatpush.msra.mxu0 0.0
    %75 = vmatpush.msra.mxu0 0.0
    %76 = vmatpush.msra.mxu0 0.0
    %77 = vmatpush.msra.mxu0 0.0
    %78 = vmatpush.msra.mxu0 %v43
    %79 = vmatpush.msra.mxu0 %v41
    %80 = vmatpush.msra.mxu0 %v39
    %81 = vmatpush.msra.mxu0 %v37
    %82 = vmatpush.msra.mxu0 %v35
    %83 = vmatpush.msra.mxu0 %v33
    %84 = vmatpush.msra.mxu0 %v31
    %85 = vmatpush.msra.mxu0 %v29
    %86 = vmatpush.msra.mxu0 %v27
    %87 = vmatpush.msra.mxu0 %v25
    %88 = vmatpush.msra.mxu0 %v23
    %89 = vmatpush.msra.mxu0 %v21
    %90 = vmatmul.f32.gmra.mxu0 %v52
    %v91 = vpop.f32.mrf.mxu0
    %v92 = vadd.f32 %v47, %v91
    %93 = vdwg.mxu0
    %v94 = vxor.u32 %v72, 2147483648
    %v95 = vmul.f32 %v94, 1.442695
    %v96 = vpow.pop %v95
    %v97 = vadd.f32 %v96, 1.0
    %v98 = vrcp.pop %v97
    %v99 = vmul.f32 %v97, %v98
    %v100 = vsub.f32 1.0, %v99
    %v101 = vmul.f32 %v98, %v100
    %v102 = vadd.f32 %v98, %v101
    %vm103 = vweird.f32 %v97
    %vm104 = vweird.f32 %v98
    %vm105 = vmor %vm103, %vm104
    %v106 = vsel %vm105, %v98, %v102
    %v107 = vand.u32 2147483647, %v97
    %vm108 = vcmp.eq.f32.partialorder %v107, 8.507059e+37
    %v109 = vand.u32 %v97, 2147483648
    %v110 = vor.u32 1.1754944e-38, %v109
    %v111 = vsel %vm108, %v110, %v106
    %v112 = vmul.f32 1.0, %v111
    %v113 = vtanh.pop %v72
    %v114 = vxor.u32 %v92, 2147483648
    %v115 = vmul.f32 %v114, 1.442695
    %v116 = vpow.pop %v115
    %v117 = vadd.f32 %v116, 1.0
    %v118 = vrcp.pop %v117
    %v119 = vmul.f32 %v117, %v118
    %v120 = vsub.f32 1.0, %v119
    %v121 = vmul.f32 %v118, %v120
    %v122 = vadd.f32 %v118, %v121
    %vm123 = vweird.f32 %v117
    %vm124 = vweird.f32 %v118
    %vm125 = vmor %vm123, %vm124
    %v126 = vsel %vm125, %v118, %v122
    %v127 = vand.u32 2147483647, %v117
    %vm128 = vcmp.eq.f32.partialorder %v127, 8.507059e+37
    %v129 = vand.u32 %v117, 2147483648
    %v130 = vor.u32 1.1754944e-38, %v129
    %v131 = vsel %vm128, %v130, %v126
    %v132 = vmul.f32 1.0, %v131
    %134 = vrot.lane.b32.xlu0 %v19, 32
    %v135 = vpop.permute.xlu0 %134
    %v137 = vmul.f32 %v112, %v135
    %139 = vrot.lane.b32.xlu0 %v113, 64
    %v140 = vpop.permute.xlu0 %139
    %v142 = vmul.f32 %v112, %v140
    %144 = vrot.lane.b32.xlu0 %v142, 32
    %v145 = vpop.permute.xlu0 %144
    %v147 = vadd.f32 %v137, %v145
    %v148 = vtanh.pop %v147
    %150 = vrot.lane.b32.xlu0 %v148, 64
    %v151 = vpop.permute.xlu0 %150
    %v153 = vmul.f32 %v112, %v151
    %154 = vrot.lane.b32.xlu0 %v148, 96
    %v155 = vpop.permute.xlu0 %154
    %v157 = vmul.f32 %v132, %v155
    %159 = vrot.lane.b32.xlu0 %v153, 32
    %v160 = vpop.permute.xlu0 %159
    %163 = vrot.lane.b32.xlu0 %v157, 64
    %v164 = vpop.permute.xlu0 %163
    %vm166 = vcmask 261120
    %v167 = vsel %vm166, %v160, %v147
    %vm168 = vcmask 523264
    %v169 = vsel %vm168, %v167, %v164
    %vm170 = vcmask 779264
    %171 = vst.msk [vmem:[#allocation2] sm:$0x3] %vm170, %v169
    // Predicated region
    $region18: #{tpu_custom_call.1} parent=1 // pred_check
      _
    $region19: #{tpu_custom_call.1} parent=1 // pred_check_branch
      %173 = sbr.rel (0) target = $region21
    $region20: #{tpu_custom_call.1} parent=1 // pred_region
      %175 = vsyncadd [#allocation3], 0
      %s177 = sshll.u32 [#allocation2], 4
      %s178 = int_to_ptr.vmem [resolvable:$true] %s177
      %s179 = sshll.u32 %s4, 4
      %s180 = int_to_ptr.hbm [resolvable:$true] %s179
      %182 = dma.vmem_to_hbm [thread:$0]  %s178, 32, %s180, [#allocation3]
    $region21: #{tpu_custom_call.1} parent=1 // pred_fallthru
      _
    // Predicated region
    $region22: #{tpu_custom_call.1} parent=1 // pred_check
      _
    $region23: #{tpu_custom_call.1} parent=1 // pred_check_branch
      %184 = sbr.rel (0) target = $region25
    $region24: #{tpu_custom_call.1} parent=1 // pred_region
      %186 = dma.done [#allocation3], 32
    $region25: #{tpu_custom_call.1} parent=1 // pred_fallthru
      _
    %187 = vsyncpa [#allocation3], 1

</llo_original>
